<compile_context>
chip_gen: v6e
topology: v6e:2x2x1
jax: 0.10.0
libtpu: 0.0.40
codegen_flags: <defaults>
</compile_context>

<pallas_src>
import functools

import jax
import jax.numpy as jnp
from jax.experimental import pallas as pl
from jax.experimental.pallas import tpu as pltpu


def _obj_matrix_kernel(trg_ref, src_ref, w_ref, q_ref):
    """One batch-block: Q_ff[bb] = sum_k w[bb,k] * vecX[bb,:,k] vecX[bb,:,k]^T."""
    bb_block = trg_ref.shape[0]
    n = trg_ref.shape[-1]

    # Static unrolled loop over the (small) number of batches in this block.
    for bb in range(bb_block):
        trg = trg_ref[bb]          # (3, N)
        src = src_ref[bb]          # (3, N)
        w = w_ref[bb]              # (1, N)

        # vecX[3*i + j, k] = trg[i, k] * src[j, k]   (row-major collapse of
        # (i, j), matching torch.reshape of einsum('bik,bjk->bijk', trg, src)).
        vec_x = (trg[:, None, :] * src[None, :, :]).reshape(9, n)

        # Weighted Gram, contracting the lane (keypoint) axis of BOTH operands
        # (no explicit .T, so no physical XLU transpose of a (9, N) operand).
        gram = jax.lax.dot_general(
            vec_x * w,
            vec_x,
            dimension_numbers=(((1,), (1,)), ((), ())),
            preferred_element_type=jnp.float32,
        )  # (9, 9)

        q_ref[bb] = gram.astype(q_ref.dtype)


def _choose_batch_block(B, N, max_bb):
    """Pick a batch block size that divides B, keeps per-step VMEM modest and
    (when B >= 2) leaves at least two parallel grid steps for v7x's 2 TCs."""
    # Keep Bb*N small enough that double-buffered inputs + in-kernel
    # intermediates stay well inside the default scoped-VMEM limit on every
    # generation (including v7x's 64 MiB physical VMEM).
    cap = max(1, min(max_bb, (1 << 16) // max(N, 1)))
    cap = min(cap, B)
    if B >= 2:
        cap = min(cap, (B + 1) // 2)   # >= 2 grid steps -> both v7x TCs busy
    cap = max(cap, 1)
    bb = cap
    while B % bb:
        bb -= 1
    return bb


@functools.partial(jax.jit, static_argnames=("batch_block",))
def get_obj_matrix_vec(keypoints_src, keypoints_trg, weights, batch_block=8):
    """Pallas version of EssentialSDPBlock.get_obj_matrix_vec (scale_offset=False).

    Args:
        keypoints_src: (B, 3, N) float32 homogenized source keypoints.
        keypoints_trg: (B, 3, N) float32 homogenized target keypoints.
        weights:       (B, 1, N) float32 per-keypoint weights.
    Returns:
        Q: (B, 13, 13) float32 QCQP cost matrices.
    """
    B, _, N = keypoints_src.shape
    bb = _choose_batch_block(B, N, batch_block)
    num_blocks = B // bb

    # TODO(synk): for extremely large N (hundreds of thousands of keypoints),
    # reintroduce an N-reduction grid axis; unnecessary for keypoint workloads.
    grid_spec = pltpu.PrefetchScalarGridSpec(
        num_scalar_prefetch=0,
        grid=(num_blocks,),
        in_specs=[
            pl.BlockSpec((bb, 3, N), lambda g: (g, 0, 0)),   # keypoints_trg
            pl.BlockSpec((bb, 3, N), lambda g: (g, 0, 0)),   # keypoints_src
            pl.BlockSpec((bb, 1, N), lambda g: (g, 0, 0)),   # weights
        ],
        out_specs=pl.BlockSpec((bb, 9, 9), lambda g: (g, 0, 0)),
    )

    q_ff = pl.pallas_call(
        _obj_matrix_kernel,
        out_shape=jax.ShapeDtypeStruct((B, 9, 9), jnp.float32),
        grid_spec=grid_spec,
        compiler_params=pltpu.CompilerParams(
            dimension_semantics=("parallel",)
        ),
    )(keypoints_trg, keypoints_src, weights)

    # One-time, tiny (B*13*13 floats) placement of Q_ff into the 13x13 QCQP
    # cost matrix: row 0 is the homogenization var 'h', rows 10:13 are 't'.
    Q = jnp.zeros((B, 13, 13), jnp.float32).at[:, 1:10, 1:10].set(q_ff)
    return Q


def _reference(keypoints_src, keypoints_trg, weights):
    """Pure-JAX reference mirroring the PyTorch code."""
    B, _, N = keypoints_src.shape
    w = jnp.squeeze(weights, 1)                                    # (B, N)
    X = jnp.einsum("bik,bjk->bijk", keypoints_trg, keypoints_src)  # (B,3,3,N)
    vecX = X.reshape(B, 9, N)
    Q_ff = jnp.einsum("bik,bjk,bk->bij", vecX, vecX, w)            # (B,9,9)
    Q = jnp.zeros((B, 13, 13), jnp.float32)
    Q = Q.at[:, 1:10, 1:10].set(Q_ff)
    return Q


if __name__ == "__main__":
    # TODO(synk): the SDP solve (MOSEK / SDPRLayer / clique decomposition) and
    # the essential-matrix recovery downstream of Q have no Pallas equivalent.
    key = jax.random.PRNGKey(0)
    k1, k2, k3 = jax.random.split(key, 3)

    B, N = 2, 200  # small, consistent with Bx3xN keypoint inputs
    # Homogenized normalized 2D points: last row = 1.
    src_xy = jax.random.normal(k1, (B, 2, N), jnp.float32)
    trg_xy = jax.random.normal(k2, (B, 2, N), jnp.float32)
    ones = jnp.ones((B, 1, N), jnp.float32)
    keypoints_src = jnp.concatenate([src_xy, ones], axis=1)   # (B, 3, N)
    keypoints_trg = jnp.concatenate([trg_xy, ones], axis=1)   # (B, 3, N)
    weights = jax.nn.sigmoid(jax.random.normal(k3, (B, 1, N), jnp.float32))

    Q = get_obj_matrix_vec(keypoints_src, keypoints_trg, weights)
    Q = jax.block_until_ready(Q)

    Q_ref = _reference(keypoints_src, keypoints_trg, weights)
    assert Q.shape == (B, 13, 13)
    assert jnp.allclose(Q, Q_ref, rtol=1e-5, atol=1e-4), float(
        jnp.max(jnp.abs(Q - Q_ref))
    )
    print("KERNEL_OK")
</pallas_src>

<mosaic_0001>
module attributes {stable_mosaic.version = 11 : i64} {
  func.func @_obj_matrix_kernel(%arg0: i32, %arg1: memref<1x3x200xf32, #tpu.memory_space<vmem>>, %arg2: memref<1x3x200xf32, #tpu.memory_space<vmem>>, %arg3: memref<1x1x200xf32, #tpu.memory_space<vmem>>, %arg4: memref<1x9x9xf32, #tpu.memory_space<vmem>>) attributes {dimension_semantics = [#tpu.dimension_semantics<parallel>], iteration_bounds = array<i64: 2>, scalar_prefetch = 0 : i64, scratch_operands = 0 : i64, tpu.core_type = #tpu.core_type<tc>, window_params = [{transform_indices = @transform_0, window_bounds = array<i64: 1, 3, 200>}, {transform_indices = @transform_1, window_bounds = array<i64: 1, 3, 200>}, {transform_indices = @transform_2, window_bounds = array<i64: 1, 1, 200>}, {transform_indices = @transform_3, window_bounds = array<i64: 1, 9, 9>}]} {
    %c0 = arith.constant 0 : index
    %c0_0 = arith.constant 0 : index
    %c0_1 = arith.constant 0 : index
    %0 = vector.load %arg1[%c0, %c0_0, %c0_1] : memref<1x3x200xf32, #tpu.memory_space<vmem>>, vector<1x3x200xf32>
    %1 = vector.shape_cast %0 : vector<1x3x200xf32> to vector<3x200xf32>
    %c0_2 = arith.constant 0 : index
    %c0_3 = arith.constant 0 : index
    %c0_4 = arith.constant 0 : index
    %2 = vector.load %arg2[%c0_2, %c0_3, %c0_4] : memref<1x3x200xf32, #tpu.memory_space<vmem>>, vector<1x3x200xf32>
    %3 = vector.shape_cast %2 : vector<1x3x200xf32> to vector<3x200xf32>
    %c0_5 = arith.constant 0 : index
    %c0_6 = arith.constant 0 : index
    %c0_7 = arith.constant 0 : index
    %4 = vector.load %arg3[%c0_5, %c0_6, %c0_7] : memref<1x1x200xf32, #tpu.memory_space<vmem>>, vector<1x1x200xf32>
    %5 = vector.shape_cast %4 : vector<1x1x200xf32> to vector<1x200xf32>
    %6 = vector.shape_cast %1 : vector<3x200xf32> to vector<3x1x200xf32>
    %7 = vector.shape_cast %3 : vector<3x200xf32> to vector<1x3x200xf32>
    %8 = vector.broadcast %6 : vector<3x1x200xf32> to vector<3x3x200xf32>
    %9 = vector.broadcast %7 : vector<1x3x200xf32> to vector<3x3x200xf32>
    %10 = arith.mulf %8, %9 : vector<3x3x200xf32>
    %11 = vector.shape_cast %10 : vector<3x3x200xf32> to vector<9x200xf32>
    %12 = vector.broadcast %5 : vector<1x200xf32> to vector<9x200xf32>
    %13 = arith.mulf %11, %12 : vector<9x200xf32>
    %cst = arith.constant dense<0.000000e+00> : vector<9x9xf32>
    %14 = tpu.matmul %13, %11, %cst {dimension_numbers = #tpu.dot_dimension_numbers<[1], [1], [0], [0], [0, 0, 1, 0], [], []>} : vector<9x200xf32>, vector<9x200xf32>, vector<9x9xf32> -> vector<9x9xf32>
    %c0_8 = arith.constant 0 : index
    %c0_9 = arith.constant 0 : index
    %c0_10 = arith.constant 0 : index
    %15 = vector.load %arg4[%c0_8, %c0_9, %c0_10] : memref<1x9x9xf32, #tpu.memory_space<vmem>>, vector<1x9x9xf32>
    %16 = vector.shape_cast %15 : vector<1x9x9xf32> to vector<9x9xf32>
    %17 = vector.shape_cast %14 : vector<9x9xf32> to vector<1x9x9xf32>
    tpu.vector_store %arg4[%c0_8, %c0_9, %c0_10], %17 {strides = array<i32>} : memref<1x9x9xf32, #tpu.memory_space<vmem>>, vector<1x9x9xf32>,
    return
  }
  func.func @transform_0(%arg0: i32) -> (i32, i32, i32) {
    %c0_i32 = arith.constant 0 : i32
    %c0_i32_0 = arith.constant 0 : i32
    %c0_i32_1 = arith.constant 0 : i32
    return %arg0, %c0_i32, %c0_i32_0 : i32, i32, i32
  }
  func.func @transform_1(%arg0: i32) -> (i32, i32, i32) {
    %c0_i32 = arith.constant 0 : i32
    %c0_i32_0 = arith.constant 0 : i32
    %c0_i32_1 = arith.constant 0 : i32
    return %arg0, %c0_i32, %c0_i32_0 : i32, i32, i32
  }
  func.func @transform_2(%arg0: i32) -> (i32, i32, i32) {
    %c0_i32 = arith.constant 0 : i32
    %c0_i32_0 = arith.constant 0 : i32
    %c0_i32_1 = arith.constant 0 : i32
    return %arg0, %c0_i32, %c0_i32_0 : i32, i32, i32
  }
  func.func @transform_3(%arg0: i32) -> (i32, i32, i32) {
    %c0_i32 = arith.constant 0 : i32
    %c0_i32_0 = arith.constant 0 : i32
    %c0_i32_1 = arith.constant 0 : i32
    return %arg0, %c0_i32, %c0_i32_0 : i32, i32, i32
  }
}

</mosaic_0001>

<llo_original>
// kernel: get_obj_matrix_vec.1
$region0: #{get_obj_matrix_vec.1}
  #allocation0 [shape = 'u32[]', space=smem, size = 0x4, offset = 0x4, fixed_abs, tag = 'smem constant byte address 0x4 - core index']
  #allocation1 [shape = 'u32[144,128]{1,0:T(1,128)}', space=vmem, size = 0x12000, scoped, tag = 'internal scratch']
  %s0 = inlined_call_operand.vmem [shape: f32[2,3,200], index: 0, kind: input, shape index: {}]
  %s1 = inlined_call_operand.vmem [shape: f32[2,3,200], index: 1, kind: input, shape index: {}]
  %s2 = inlined_call_operand.vmem [shape: f32[2,1,200], index: 2, kind: input, shape index: {}]
  %s3 = inlined_call_operand.vmem [shape: f32[2,9,9], index: 3, kind: output, shape index: {}]
  %s4 = sld [smem:[#allocation0]]
  $region45: #{get_obj_matrix_vec.1} parent=0
    _
  %s6 = ssub.s32 1, %s4
  %s7 = scalar_select 0, %s6, %s4
  loop: start=0, step=1, limit=4
  $region2: #{get_obj_matrix_vec.1} parent=0 // loop_pre_header
    _
  $region3: #{get_obj_matrix_vec.1} parent=0 // loop_header
    %s9 = sphi 0, %s13
    %p10 = scmp.ge.s32.totalorder %s9, 4
    %s19 = sphi 0, %s21
    %s22 = sphi 0, %s19
    %s23 = sphi 0, %s22
    %s39 = sphi 0, %s23
    %s45 = sphi 0, %s47
    %s48 = sphi 0, %s45
    %s49 = sphi 0, %s48
    %s65 = sphi 0, %s49
    %s71 = sphi 0, %s73
    %s74 = sphi 0, %s71
    %s75 = sphi 0, %s74
    %s91 = sphi 0, %s75
    %s97 = sphi 0, %s99
    %s100 = sphi 0, %s97
    %s101 = sphi 0, %s100
    %s117 = sphi 0, %s101
  $region4: #{get_obj_matrix_vec.1} parent=0 // loop_header_branch
    %12 = sbr.rel (%p10) target = $region8
  $region5: #{get_obj_matrix_vec.1} parent=0 // loop_body
    %s14 = ssub.s32 %s9, 1
    %s15 = ssub.s32 %s9, 2
    %s16 = sadd.s32 %s9, 1
    %s17 = ssub.s32 %s9, %s16
    %p18 = scmp.eq.s32.totalorder %s17, 0
    %s20 = sadd.s32 %s19, 1
    %s21 = scalar_select %p18, %s19, %s20
    %p24 = pneg %p18
    %p25 = scmp.eq.s32.totalorder %s9, 1
    %p26 = por %p24, %p25
    %p27 = scmp.ne.s32.totalorder %s19, %s22
    %p28 = scmp.eq.s32.totalorder %s9, 0
    %p29 = por %p27, %p28
    %p30 = scmp.ne.s32.totalorder %s19, %s22
    %p31 = scmp.eq.s32.totalorder %s14, 1
    %p32 = por %p30, %p31
    %p33 = scmp.ne.s32.totalorder %s22, %s23
    %p34 = scmp.eq.s32.totalorder %s14, 0
    %p35 = por %p33, %p34
    %p36 = scmp.ne.s32.totalorder %s22, %s23
    %p37 = scmp.eq.s32.totalorder %s15, 1
    %p38 = por %p36, %p37
    %p40 = scmp.ne.s32.totalorder %s23, %s39
    %p41 = scmp.eq.s32.totalorder %s15, 0
    %p42 = por %p40, %p41
    %s43 = ssub.s32 %s9, %s16
    %p44 = scmp.eq.s32.totalorder %s43, 0
    %s46 = sadd.s32 %s45, 1
    %s47 = scalar_select %p44, %s45, %s46
    %p50 = pneg %p44
    %p51 = scmp.eq.s32.totalorder %s9, 1
    %p52 = por %p50, %p51
    %p53 = scmp.ne.s32.totalorder %s45, %s48
    %p54 = scmp.eq.s32.totalorder %s9, 0
    %p55 = por %p53, %p54
    %p56 = scmp.ne.s32.totalorder %s45, %s48
    %p57 = scmp.eq.s32.totalorder %s14, 1
    %p58 = por %p56, %p57
    %p59 = scmp.ne.s32.totalorder %s48, %s49
    %p60 = scmp.eq.s32.totalorder %s14, 0
    %p61 = por %p59, %p60
    %p62 = scmp.ne.s32.totalorder %s48, %s49
    %p63 = scmp.eq.s32.totalorder %s15, 1
    %p64 = por %p62, %p63
    %p66 = scmp.ne.s32.totalorder %s49, %s65
    %p67 = scmp.eq.s32.totalorder %s15, 0
    %p68 = por %p66, %p67
    %s69 = ssub.s32 %s9, %s16
    %p70 = scmp.eq.s32.totalorder %s69, 0
    %s72 = sadd.s32 %s71, 1
    %s73 = scalar_select %p70, %s71, %s72
    %p76 = pneg %p70
    %p77 = scmp.eq.s32.totalorder %s9, 1
    %p78 = por %p76, %p77
    %p79 = scmp.ne.s32.totalorder %s71, %s74
    %p80 = scmp.eq.s32.totalorder %s9, 0
    %p81 = por %p79, %p80
    %p82 = scmp.ne.s32.totalorder %s71, %s74
    %p83 = scmp.eq.s32.totalorder %s14, 1
    %p84 = por %p82, %p83
    %p85 = scmp.ne.s32.totalorder %s74, %s75
    %p86 = scmp.eq.s32.totalorder %s14, 0
    %p87 = por %p85, %p86
    %p88 = scmp.ne.s32.totalorder %s74, %s75
    %p89 = scmp.eq.s32.totalorder %s15, 1
    %p90 = por %p88, %p89
    %p92 = scmp.ne.s32.totalorder %s75, %s91
    %p93 = scmp.eq.s32.totalorder %s15, 0
    %p94 = por %p92, %p93
    %s95 = ssub.s32 %s9, %s16
    %p96 = scmp.eq.s32.totalorder %s95, 0
    %s98 = sadd.s32 %s97, 1
    %s99 = scalar_select %p96, %s97, %s98
    %p102 = pneg %p96
    %p103 = scmp.eq.s32.totalorder %s9, 1
    %p104 = por %p102, %p103
    %p105 = scmp.ne.s32.totalorder %s97, %s100
    %p106 = scmp.eq.s32.totalorder %s9, 0
    %p107 = por %p105, %p106
    %p108 = scmp.ne.s32.totalorder %s97, %s100
    %p109 = scmp.eq.s32.totalorder %s14, 1
    %p110 = por %p108, %p109
    %p111 = scmp.ne.s32.totalorder %s100, %s101
    %p112 = scmp.eq.s32.totalorder %s14, 0
    %p113 = por %p111, %p112
    %p114 = scmp.ne.s32.totalorder %s100, %s101
    %p115 = scmp.eq.s32.totalorder %s15, 1
    %p116 = por %p114, %p115
    %p118 = scmp.ne.s32.totalorder %s101, %s117
    %p119 = scmp.eq.s32.totalorder %s15, 0
    %p120 = por %p118, %p119
    %p121 = scmp.le.s32.totalorder 1, %s9
    %p122 = scmp.lt.s32.totalorder %s9, 3
    %p123 = pnand %p121, %p122
    %p124 = pneg %p123
    // Predicated region
    $region9: #{get_obj_matrix_vec.1} parent=5 // pred_check
      _
    $region10: #{get_obj_matrix_vec.1} parent=5 // pred_check_branch
      %126 = sbr.rel (%p123) target = $region12
    $region11: #{get_obj_matrix_vec.1} parent=5 // pred_region
      %s127 = ssub.s32 %s9, 1
    $region12: #{get_obj_matrix_vec.1} parent=5 // pred_fallthru
      _
    %p128 = scmp.lt.s32.totalorder %s9, 2
    // Predicated region
    $region13: #{get_obj_matrix_vec.1} parent=5 // pred_check
      %p129 = pneg %p128
    $region14: #{get_obj_matrix_vec.1} parent=5 // pred_check_branch
      %131 = sbr.rel (%p129) target = $region16
    $region15: #{get_obj_matrix_vec.1} parent=5 // pred_region
      // Predicated region
      $region17: #{get_obj_matrix_vec.1} parent=15 // pred_check
        %p132 = pneg %p29
      $region18: #{get_obj_matrix_vec.1} parent=15 // pred_check_branch
        %134 = sbr.rel (%p132) target = $region20
      $region19: #{get_obj_matrix_vec.1} parent=15 // pred_region
        %p135 = scmp.lt.s32.totalorder %s9, 1
        %s136 = scalar_select %p135, %s9, 1
        %s137 = smul.addr %s136, 2
        %s138 = smul.addr %s137, 4
        %s139 = scalar_lea.vmem %s0, %s138
      $region20: #{get_obj_matrix_vec.1} parent=15 // pred_fallthru
        _
      // Predicated region
      $region21: #{get_obj_matrix_vec.1} parent=15 // pred_check
        %p140 = pneg %p55
      $region22: #{get_obj_matrix_vec.1} parent=15 // pred_check_branch
        %142 = sbr.rel (%p140) target = $region24
      $region23: #{get_obj_matrix_vec.1} parent=15 // pred_region
        %p143 = scmp.lt.s32.totalorder %s9, 1
        %s144 = scalar_select %p143, %s9, 1
        %s145 = smul.addr %s144, 2
        %s146 = smul.addr %s145, 4
        %s147 = scalar_lea.vmem %s1, %s146
      $region24: #{get_obj_matrix_vec.1} parent=15 // pred_fallthru
        _
      // Predicated region
      $region25: #{get_obj_matrix_vec.1} parent=15 // pred_check
        %p148 = pneg %p81
      $region26: #{get_obj_matrix_vec.1} parent=15 // pred_check_branch
        %150 = sbr.rel (%p148) target = $region28
      $region27: #{get_obj_matrix_vec.1} parent=15 // pred_region
        %p151 = scmp.lt.s32.totalorder %s9, 1
        %s152 = scalar_select %p151, %s9, 1
        %s153 = smul.addr %s152, 2
        %s154 = scalar_lea.vmem %s2, %s153
      $region28: #{get_obj_matrix_vec.1} parent=15 // pred_fallthru
        _
    $region16: #{get_obj_matrix_vec.1} parent=5 // pred_fallthru
      _
    %p155 = scmp.le.s32.totalorder 1, %s9
    %p156 = scmp.lt.s32.totalorder %s9, 3
    %p157 = pnand %p155, %p156
    %p158 = pneg %p157
    // Predicated region
    $region29: #{get_obj_matrix_vec.1} parent=5 // pred_check
      _
    $region30: #{get_obj_matrix_vec.1} parent=5 // pred_check_branch
      %160 = sbr.rel (%p157) target = $region32
    $region31: #{get_obj_matrix_vec.1} parent=5 // pred_region
      %s161 = ssub.s32 %s9, 1
      %p162 = scmp.lt.s32.totalorder %s14, 1
      %s163 = scalar_select %p162, %s14, 1
      %s164 = smul.addr %s163, 2
      %s165 = smul.addr %s164, 4
      %s166 = scalar_lea.vmem %s0, %s165
      %p167 = pneg %p35
      %p168 = pneg %p32
      %p169 = scmp.lt.s32.totalorder %s14, 1
      %s170 = scalar_select %p169, %s14, 1
      %s171 = smul.addr %s170, 2
      %s172 = smul.addr %s171, 4
      %s173 = scalar_lea.vmem %s1, %s172
      %p174 = pneg %p61
      %p175 = pneg %p58
      %p176 = scmp.lt.s32.totalorder %s14, 1
      %s177 = scalar_select %p176, %s14, 1
      %s178 = smul.addr %s177, 2
      %s179 = scalar_lea.vmem %s2, %s178
      %p180 = pneg %p87
      %p181 = pneg %p84
      %p182 = pneg %p113
      %p183 = pneg %p110
      %p184 = scmp.lt.s32.totalorder %s14, 1
      %s185 = scalar_select %p184, %s14, 1
      %s186 = smul.addr %s185, 2
      %s187 = smul.addr %s186, 8
      %s188 = scalar_lea.vmem %s3, %s187
      %p189 = scmp.lt.s32.totalorder %s14, 1
      %s190 = scalar_select %p189, %s14, 1
      %s191 = smul.addr %s190, 2
      %s192 = smul.addr %s191, 4
      %s193 = scalar_lea.vmem %s0, %s192
      %p194 = scmp.lt.s32.totalorder %s14, 1
      %s195 = scalar_select %p194, %s14, 1
      %s196 = smul.addr %s195, 2
      %s197 = smul.addr %s196, 4
      %s198 = scalar_lea.vmem %s1, %s197
      %p199 = scmp.lt.s32.totalorder %s14, 1
      %s200 = scalar_select %p199, %s14, 1
      %s201 = smul.addr %s200, 2
      %s202 = scalar_lea.vmem %s2, %s201
      %p203 = scmp.lt.s32.totalorder %s14, 1
      %s204 = scalar_select %p203, %s14, 1
      %s205 = smul.addr %s204, 2
      %s206 = smul.addr %s205, 8
      %s207 = scalar_lea.vmem %s3, %s206
      %v208 = vld [vmem:[%s193] sm:$0x77]
      %v209 = vld [vmem:[%s198] sm:$0x77]
      %v210 = vld [vmem:[%s202] sm:$0x3]
      %v213 = vunpack.c.l.s4 1966171168
      %v214 = vunpack.c.0.s8 %v213
      %v215 = vlaneseq
      %v216 = vshrl.u32 %v215, 7
      %v217 = vsub.s32 %v214, %v216
      %v218 = vrot.slane %v208, %v217
      %v219 = vcombine.high %v218, %v218
      %v221 = vunpack.c.l.s4 1966171168
      %v222 = vunpack.c.0.s8 %v221
      %v223 = vlaneseq
      %v224 = vshrl.u32 %v223, 7
      %v225 = vsub.s32 %v222, %v224
      %v226 = vrot.slane %v218, %v225
      %v228 = vunpack.c.l.s4 1966171168
      %v229 = vunpack.c.0.s8 %v228
      %v230 = vlaneseq
      %v231 = vshrl.u32 %v230, 7
      %v232 = vsub.s32 %v229, %v231
      %v233 = vrot.slane %v219, %v232
      %v234 = vcombine.high %v226, %v226
      %v235 = vlaneseq
      %v236 = vshrl.u32 %v235, 7
      %v237 = vsub.s32 0, %v236
      %v238 = vrot.slane %v226, %v237
      %v239 = vlaneseq
      %v240 = vshrl.u32 %v239, 7
      %v241 = vsub.s32 1, %v240
      %v242 = vrot.slane %v226, %v241
      %v243 = vlaneseq
      %v244 = vshrl.u32 %v243, 7
      %v245 = vsub.s32 0, %v244
      %v246 = vrot.slane %v233, %v245
      %v247 = vlaneseq
      %v248 = vshrl.u32 %v247, 7
      %v249 = vsub.s32 1, %v248
      %v250 = vrot.slane %v233, %v249
      %v251 = vlaneseq
      %v252 = vshrl.u32 %v251, 7
      %v253 = vsub.s32 0, %v252
      %v254 = vrot.slane %v234, %v253
      %v255 = vlaneseq
      %v256 = vshrl.u32 %v255, 7
      %v257 = vsub.s32 1, %v256
      %v258 = vrot.slane %v234, %v257
      %v266 = vcombine.high %v209, %v209
      %v268 = vmul.f32 %v238, %v209
      %v269 = vmul.f32 %v242, %v266
      %v270 = vmul.f32 %v246, %v209
      %v271 = vmul.f32 %v250, %v266
      %v272 = vmul.f32 %v254, %v209
      %v273 = vmul.f32 %v258, %v266
      %v280 = vcombine.low %v268, %v269
      %v282 = vunpack.c.l.s4 1966171168
      %v283 = vunpack.c.0.s8 %v282
      %v284 = vlaneseq
      %v285 = vshrl.u32 %v284, 7
      %v286 = vsub.s32 %v283, %v285
      %v287 = vrot.slane %v280, %v286
      %v288 = vcombine.high %v287, %v287
      %v290 = vunpack.c.l.s4 1966171168
      %v291 = vunpack.c.0.s8 %v290
      %v292 = vlaneseq
      %v293 = vshrl.u32 %v292, 7
      %v294 = vsub.s32 %v291, %v293
      %v295 = vrot.slane %v287, %v294
      %v297 = vunpack.c.l.s4 1966171168
      %v298 = vunpack.c.0.s8 %v297
      %v299 = vlaneseq
      %v300 = vshrl.u32 %v299, 7
      %v301 = vsub.s32 %v298, %v300
      %v302 = vrot.slane %v288, %v301
      %v303 = vcombine.high %v295, %v295
      %v304 = vcombine.low %v270, %v271
      %v306 = vunpack.c.l.s4 1966171168
      %v307 = vunpack.c.0.s8 %v306
      %v308 = vlaneseq
      %v309 = vshrl.u32 %v308, 7
      %v310 = vsub.s32 %v307, %v309
      %v311 = vrot.slane %v304, %v310
      %v312 = vcombine.high %v311, %v311
      %v314 = vunpack.c.l.s4 1966171168
      %v315 = vunpack.c.0.s8 %v314
      %v316 = vlaneseq
      %v317 = vshrl.u32 %v316, 7
      %v318 = vsub.s32 %v315, %v317
      %v319 = vrot.slane %v311, %v318
      %v321 = vunpack.c.l.s4 1966171168
      %v322 = vunpack.c.0.s8 %v321
      %v323 = vlaneseq
      %v324 = vshrl.u32 %v323, 7
      %v325 = vsub.s32 %v322, %v324
      %v326 = vrot.slane %v312, %v325
      %v327 = vcombine.high %v319, %v319
      %v328 = vcombine.low %v272, %v273
      %v330 = vunpack.c.l.s4 1966171168
      %v331 = vunpack.c.0.s8 %v330
      %v332 = vlaneseq
      %v333 = vshrl.u32 %v332, 7
      %v334 = vsub.s32 %v331, %v333
      %v335 = vrot.slane %v328, %v334
      %v336 = vcombine.high %v335, %v335
      %v338 = vunpack.c.l.s4 1966171168
      %v339 = vunpack.c.0.s8 %v338
      %v340 = vlaneseq
      %v341 = vshrl.u32 %v340, 7
      %v342 = vsub.s32 %v339, %v341
      %v343 = vrot.slane %v335, %v342
      %v345 = vunpack.c.l.s4 1966171168
      %v346 = vunpack.c.0.s8 %v345
      %v347 = vlaneseq
      %v348 = vshrl.u32 %v347, 7
      %v349 = vsub.s32 %v346, %v348
      %v350 = vrot.slane %v336, %v349
      %v351 = vcombine.high %v343, %v343
      %v362 = vlaneseq
      %v363 = vshrl.u32 %v362, 7
      %v364 = vsub.s32 0, %v363
      %v365 = vrot.slane %v210, %v364
      %v366 = vlaneseq
      %v367 = vshrl.u32 %v366, 7
      %v368 = vsub.s32 1, %v367
      %v369 = vrot.slane %v210, %v368
      %v370 = vcombine.low %v365, %v369
      %v371 = vcombine.high %v365, %v369
      %v373 = vunpack.c.l.s4 1966171168
      %v374 = vunpack.c.0.s8 %v373
      %v375 = vlaneseq
      %v376 = vshrl.u32 %v375, 7
      %v377 = vsub.s32 %v374, %v376
      %v378 = vrot.slane %v370, %v377
      %v380 = vunpack.c.l.s4 1966171168
      %v381 = vunpack.c.0.s8 %v380
      %v382 = vlaneseq
      %v383 = vshrl.u32 %v382, 7
      %v384 = vsub.s32 %v381, %v383
      %v385 = vrot.slane %v371, %v384
      %v386 = vcombine.high %v378, %v378
      %v387 = vcombine.high %v385, %v385
      %v389 = vunpack.c.l.s4 1966171168
      %v390 = vunpack.c.0.s8 %v389
      %v391 = vlaneseq
      %v392 = vshrl.u32 %v391, 7
      %v393 = vsub.s32 %v390, %v392
      %v394 = vrot.slane %v378, %v393
      %v396 = vunpack.c.l.s4 1966171168
      %v397 = vunpack.c.0.s8 %v396
      %v398 = vlaneseq
      %v399 = vshrl.u32 %v398, 7
      %v400 = vsub.s32 %v397, %v399
      %v401 = vrot.slane %v385, %v400
      %v403 = vunpack.c.l.s4 1966171168
      %v404 = vunpack.c.0.s8 %v403
      %v405 = vlaneseq
      %v406 = vshrl.u32 %v405, 7
      %v407 = vsub.s32 %v404, %v406
      %v408 = vrot.slane %v386, %v407
      %v410 = vunpack.c.l.s4 1966171168
      %v411 = vunpack.c.0.s8 %v410
      %v412 = vlaneseq
      %v413 = vshrl.u32 %v412, 7
      %v414 = vsub.s32 %v411, %v413
      %v415 = vrot.slane %v387, %v414
      %v416 = vcombine.high %v394, %v394
      %v417 = vcombine.high %v401, %v401
      %v418 = vcombine.high %v408, %v408
      %v419 = vcombine.high %v415, %v415
      %v428 = vmul.f32 %v295, %v394
      %v429 = vmul.f32 %v302, %v408
      %v430 = vmul.f32 %v303, %v416
      %v431 = vmul.f32 %v319, %v418
      %v432 = vmul.f32 %v326, %v401
      %v433 = vmul.f32 %v327, %v415
      %v434 = vmul.f32 %v343, %v417
      %v435 = vmul.f32 %v350, %v419
      %v436 = vmul.f32 %v351, %v394
      %v446 = vcombine.low %v428, %v429
      %v447 = vcombine.low %v430, %v431
      %v448 = vcombine.low %v432, %v433
      %v449 = vcombine.low %v434, %v435
      %v451 = vunpack.c.l.s4 1966171168
      %v452 = vunpack.c.0.s8 %v451
      %v453 = vlaneseq
      %v454 = vshrl.u32 %v453, 7
      %v455 = vsub.s32 %v452, %v454
      %v456 = vrot.slane %v446, %v455
      %v458 = vunpack.c.l.s4 1966171168
      %v459 = vunpack.c.0.s8 %v458
      %v460 = vlaneseq
      %v461 = vshrl.u32 %v460, 7
      %v462 = vsub.s32 %v459, %v461
      %v463 = vrot.slane %v447, %v462
      %v465 = vunpack.c.l.s4 1966171168
      %v466 = vunpack.c.0.s8 %v465
      %v467 = vlaneseq
      %v468 = vshrl.u32 %v467, 7
      %v469 = vsub.s32 %v466, %v468
      %v470 = vrot.slane %v448, %v469
      %v472 = vunpack.c.l.s4 1966171168
      %v473 = vunpack.c.0.s8 %v472
      %v474 = vlaneseq
      %v475 = vshrl.u32 %v474, 7
      %v476 = vsub.s32 %v473, %v475
      %v477 = vrot.slane %v449, %v476
      %v478 = vcombine.low %v456, %v463
      %v479 = vcombine.high %v456, %v463
      %v480 = vcombine.low %v470, %v477
      %v481 = vcombine.high %v470, %v477
      %v483 = vunpack.c.l.s4 1966171168
      %v484 = vunpack.c.0.s8 %v483
      %v485 = vlaneseq
      %v486 = vshrl.u32 %v485, 7
      %v487 = vsub.s32 %v484, %v486
      %v488 = vrot.slane %v478, %v487
      %v490 = vunpack.c.l.s4 1966171168
      %v491 = vunpack.c.0.s8 %v490
      %v492 = vlaneseq
      %v493 = vshrl.u32 %v492, 7
      %v494 = vsub.s32 %v491, %v493
      %v495 = vrot.slane %v479, %v494
      %v497 = vunpack.c.l.s4 1966171168
      %v498 = vunpack.c.0.s8 %v497
      %v499 = vlaneseq
      %v500 = vshrl.u32 %v499, 7
      %v501 = vsub.s32 %v498, %v500
      %v502 = vrot.slane %v480, %v501
      %v504 = vunpack.c.l.s4 1966171168
      %v505 = vunpack.c.0.s8 %v504
      %v506 = vlaneseq
      %v507 = vshrl.u32 %v506, 7
      %v508 = vsub.s32 %v505, %v507
      %v509 = vrot.slane %v481, %v508
      %v510 = vcombine.low %v488, %v502
      %v511 = vcombine.low %v495, %v509
      %v513 = vunpack.c.l.s4 1966171168
      %v514 = vunpack.c.0.s8 %v513
      %v515 = vlaneseq
      %v516 = vshrl.u32 %v515, 7
      %v517 = vsub.s32 %v514, %v516
      %v518 = vrot.slane %v436, %v517
      %v519 = vcombine.high %v518, %v518
      %v521 = vunpack.c.l.s4 1966171168
      %v522 = vunpack.c.0.s8 %v521
      %v523 = vlaneseq
      %v524 = vshrl.u32 %v523, 7
      %v525 = vsub.s32 %v522, %v524
      %v526 = vrot.slane %v518, %v525
      %v528 = vunpack.c.l.s4 1966171168
      %v529 = vunpack.c.0.s8 %v528
      %v530 = vlaneseq
      %v531 = vshrl.u32 %v530, 7
      %v532 = vsub.s32 %v529, %v531
      %v533 = vrot.slane %v519, %v532
      %v536 = vcombine.low %v295, %v302
      %v537 = vcombine.low %v303, %v319
      %v538 = vcombine.low %v326, %v327
      %v539 = vcombine.low %v343, %v350
      %v541 = vunpack.c.l.s4 1966171168
      %v542 = vunpack.c.0.s8 %v541
      %v543 = vlaneseq
      %v544 = vshrl.u32 %v543, 7
      %v545 = vsub.s32 %v542, %v544
      %v546 = vrot.slane %v536, %v545
      %v548 = vunpack.c.l.s4 1966171168
      %v549 = vunpack.c.0.s8 %v548
      %v550 = vlaneseq
      %v551 = vshrl.u32 %v550, 7
      %v552 = vsub.s32 %v549, %v551
      %v553 = vrot.slane %v537, %v552
      %v555 = vunpack.c.l.s4 1966171168
      %v556 = vunpack.c.0.s8 %v555
      %v557 = vlaneseq
      %v558 = vshrl.u32 %v557, 7
      %v559 = vsub.s32 %v556, %v558
      %v560 = vrot.slane %v538, %v559
      %v562 = vunpack.c.l.s4 1966171168
      %v563 = vunpack.c.0.s8 %v562
      %v564 = vlaneseq
      %v565 = vshrl.u32 %v564, 7
      %v566 = vsub.s32 %v563, %v565
      %v567 = vrot.slane %v539, %v566
      %v568 = vcombine.low %v546, %v553
      %v569 = vcombine.high %v546, %v553
      %v570 = vcombine.low %v560, %v567
      %v571 = vcombine.high %v560, %v567
      %v573 = vunpack.c.l.s4 1966171168
      %v574 = vunpack.c.0.s8 %v573
      %v575 = vlaneseq
      %v576 = vshrl.u32 %v575, 7
      %v577 = vsub.s32 %v574, %v576
      %v578 = vrot.slane %v568, %v577
      %v580 = vunpack.c.l.s4 1966171168
      %v581 = vunpack.c.0.s8 %v580
      %v582 = vlaneseq
      %v583 = vshrl.u32 %v582, 7
      %v584 = vsub.s32 %v581, %v583
      %v585 = vrot.slane %v569, %v584
      %v587 = vunpack.c.l.s4 1966171168
      %v588 = vunpack.c.0.s8 %v587
      %v589 = vlaneseq
      %v590 = vshrl.u32 %v589, 7
      %v591 = vsub.s32 %v588, %v590
      %v592 = vrot.slane %v570, %v591
      %v594 = vunpack.c.l.s4 1966171168
      %v595 = vunpack.c.0.s8 %v594
      %v596 = vlaneseq
      %v597 = vshrl.u32 %v596, 7
      %v598 = vsub.s32 %v595, %v597
      %v599 = vrot.slane %v571, %v598
      %v600 = vcombine.low %v578, %v592
      %v601 = vcombine.low %v585, %v599
      %v603 = vunpack.c.l.s4 1966171168
      %v604 = vunpack.c.0.s8 %v603
      %v605 = vlaneseq
      %v606 = vshrl.u32 %v605, 7
      %v607 = vsub.s32 %v604, %v606
      %v608 = vrot.slane %v351, %v607
      %v609 = vcombine.high %v608, %v608
      %v611 = vunpack.c.l.s4 1966171168
      %v612 = vunpack.c.0.s8 %v611
      %v613 = vlaneseq
      %v614 = vshrl.u32 %v613, 7
      %v615 = vsub.s32 %v612, %v614
      %v616 = vrot.slane %v608, %v615
      %v618 = vunpack.c.l.s4 1966171168
      %v619 = vunpack.c.0.s8 %v618
      %v620 = vlaneseq
      %v621 = vshrl.u32 %v620, 7
      %v622 = vsub.s32 %v619, %v621
      %v623 = vrot.slane %v609, %v622
      %vm626 = vcmask 588800
      %v627 = vsel %vm626, %v511, 0
      %v629 = vsel %vm626, %v533, 0
      %v631 = vsel %vm626, %v601, 0
      %v633 = vsel %vm626, %v623, 0
      %635 = vmatprep.subr.mxu0 0.0
      %636 = vmatpush1.xpose.msra.mxu0 0.0
      %637 = vmatprep.subr.mxu0 0.0
      %638 = vmatpush1.xpose.msra.mxu0 0.0
      %639 = vmatprep.subr.mxu0 0.0
      %640 = vmatpush1.xpose.msra.mxu0 0.0
      %641 = vmatprep.subr.mxu0 0.0
      %642 = vmatpush1.xpose.msra.mxu0 0.0
      %643 = vmatprep.subr.mxu0 0.0
      %644 = vmatpush1.xpose.msra.mxu0 0.0
      %645 = vmatprep.subr.mxu0 0.0
      %646 = vmatpush1.xpose.msra.mxu0 0.0
      %647 = vmatprep.subr.mxu0 0.0
      %648 = vmatpush1.xpose.msra.mxu0 0.0
      %649 = vmatprep.subr.mxu0 0.0
      %650 = vmatpush1.xpose.msra.mxu0 0.0
      %651 = vmatprep.subr.mxu0 0.0
      %652 = vmatpush1.xpose.msra.mxu0 0.0
      %653 = vmatprep.subr.mxu0 0.0
      %654 = vmatpush1.xpose.msra.mxu0 0.0
      %655 = vmatprep.subr.mxu0 0.0
      %656 = vmatpush1.xpose.msra.mxu0 0.0
      %657 = vmatprep.subr.mxu0 0.0
      %658 = vmatpush1.xpose.msra.mxu0 0.0
      %659 = vmatprep.subr.mxu0 0.0
      %660 = vmatpush1.xpose.msra.mxu0 0.0
      %661 = vmatprep.subr.mxu0 0.0
      %662 = vmatpush1.xpose.msra.mxu0 0.0
      %663 = vmatprep.subr.mxu0 %v633
      %664 = vmatpush1.xpose.msra.mxu0 %v616
      %665 = vmatprep.subr.mxu0 %v631
      %666 = vmatpush1.xpose.msra.mxu0 %v600
      %667 = vmatprep.subr.mxu0 0.0
      %668 = vmatpush2.xpose.msra.mxu0 0.0
      %669 = vmatprep.subr.mxu0 0.0
      %670 = vmatpush2.xpose.msra.mxu0 0.0
      %671 = vmatprep.subr.mxu0 0.0
      %672 = vmatpush2.xpose.msra.mxu0 0.0
      %673 = vmatprep.subr.mxu0 0.0
      %674 = vmatpush2.xpose.msra.mxu0 0.0
      %675 = vmatprep.subr.mxu0 0.0
      %676 = vmatpush2.xpose.msra.mxu0 0.0
      %677 = vmatprep.subr.mxu0 0.0
      %678 = vmatpush2.xpose.msra.mxu0 0.0
      %679 = vmatprep.subr.mxu0 0.0
      %680 = vmatpush2.xpose.msra.mxu0 0.0
      %681 = vmatprep.subr.mxu0 0.0
      %682 = vmatpush2.xpose.msra.mxu0 0.0
      %683 = vmatprep.subr.mxu0 0.0
      %684 = vmatpush2.xpose.msra.mxu0 0.0
      %685 = vmatprep.subr.mxu0 0.0
      %686 = vmatpush2.xpose.msra.mxu0 0.0
      %687 = vmatprep.subr.mxu0 0.0
      %688 = vmatpush2.xpose.msra.mxu0 0.0
      %689 = vmatprep.subr.mxu0 0.0
      %690 = vmatpush2.xpose.msra.mxu0 0.0
      %691 = vmatprep.subr.mxu0 0.0
      %692 = vmatpush2.xpose.msra.mxu0 0.0
      %693 = vmatprep.subr.mxu0 0.0
      %694 = vmatpush2.xpose.msra.mxu0 0.0
      %695 = vmatprep.subr.mxu0 0.0
      %696 = vmatpush2.xpose.msra.mxu0 0.0
      %697 = vmatprep.subr.mxu0 0.0
      %698 = vmatpush2.xpose.msra.mxu0 0.0
      %699 = vmatprep.mubr.f32.mxu0 %v627
      %700 = vmatmul.mubr.f32.gmra.mxu0 %v510
      %v701 = vpop.f32.mrf.mxu0
      %v702 = vadd.f32 0.0, %v701
      %v703 = vpop.f32.mrf.mxu0
      %704 = vmatprep.mubr.f32.mxu0 %v629
      %705 = vmatmul.mubr.f32.gmra.mxu0 %v526
      %v706 = vpop.f32.mrf.mxu0
      %v707 = vadd.f32 0.0, %v706
      %v708 = vpop.f32.mrf.mxu0
      %709 = vdwg.mxu0
      %vm710 = vcmask 72704
      %711 = vst.msk [vmem:[%s207] sm:$0xff] %vm710, %v702
      %vm712 = vcmask 65536
      %713 = vst.msk [vmem:[%s207 + $0x8] sm:$0x1] %vm712, %v707
      %p714 = scmp.lt.s32.totalorder %s14, 1
      %s715 = scalar_select %p714, %s14, 1
      %s716 = smul.addr %s715, 2
      %s717 = smul.addr %s716, 8
      %s718 = scalar_lea.vmem %s3, %s717
      // Predicated region
      $region33: #{get_obj_matrix_vec.1} parent=31 // pred_check
        %p719 = pneg %p110
      $region34: #{get_obj_matrix_vec.1} parent=31 // pred_check_branch
        %721 = sbr.rel (%p719) target = $region36
      $region35: #{get_obj_matrix_vec.1} parent=31 // pred_region
        _
      $region36: #{get_obj_matrix_vec.1} parent=31 // pred_fallthru
        _
    $region32: #{get_obj_matrix_vec.1} parent=5 // pred_fallthru
      _
    %p722 = scmp.le.s32.totalorder 2, %s9
    // Predicated region
    $region37: #{get_obj_matrix_vec.1} parent=5 // pred_check
      %p723 = pneg %p722
    $region38: #{get_obj_matrix_vec.1} parent=5 // pred_check_branch
      %725 = sbr.rel (%p723) target = $region40
    $region39: #{get_obj_matrix_vec.1} parent=5 // pred_region
      %s726 = ssub.s32 %s9, 2
      // Predicated region
      $region41: #{get_obj_matrix_vec.1} parent=39 // pred_check
        %p727 = pneg %p116
      $region42: #{get_obj_matrix_vec.1} parent=39 // pred_check_branch
        %729 = sbr.rel (%p727) target = $region44
      $region43: #{get_obj_matrix_vec.1} parent=39 // pred_region
        %p730 = scmp.lt.s32.totalorder %s15, 1
        %s731 = scalar_select %p730, %s15, 1
        %s732 = smul.addr %s731, 2
        %s733 = smul.addr %s732, 8
        %s734 = scalar_lea.vmem %s3, %s733
      $region44: #{get_obj_matrix_vec.1} parent=39 // pred_fallthru
        _
    $region40: #{get_obj_matrix_vec.1} parent=5 // pred_fallthru
      _
  $region6: #{get_obj_matrix_vec.1} parent=0 // loop_footer
    %s13 = sadd.s32 1, %s9
  $region7: #{get_obj_matrix_vec.1} parent=0 // loop_footer_branch
    %8 = sbr.rel target = $region3
  $region8: #{get_obj_matrix_vec.1} parent=0 // loop_exit
    _

</llo_original>
